<compile_context>
chip_gen: v7x
topology: tpu7x:2x2x1
jax: 0.10.0
libtpu: 0.0.40
codegen_flags: <defaults>
</compile_context>

<pallas_src>
import functools

import jax
import jax.numpy as jnp
from jax.experimental import pallas as pl
from jax.experimental.pallas import tpu as pltpu

LANES = 128


def _upsample_kernel(x_ref, w_ref, b_ref, a_ref, o_ref):
    # x_ref: (1, 1, (TH+2)*W, 3*C)  halo'd row tile, kw taps stacked on channels
    # w_ref: (3, 3*C, Cout_p)       per-kh im2col weights (Cout zero-padded to lanes)
    # b_ref: (1, Cout_p)            conv bias (f32)
    # a_ref: (1, Cout_p)            PReLU slope per conv channel = alpha[k // r^2] (f32)
    # o_ref: (1, 1, TH*W, Cout_p)   conv + bias + PReLU output (lane-dense store)
    m = o_ref.shape[2]                      # TH * W
    cout_p = o_ref.shape[3]
    rows = x_ref.shape[2]                   # (TH + 2) * W
    w_img = (rows - m) // 2                 # W (static)
    c3 = x_ref.shape[3]                     # 3 * C

    prec = (jax.lax.Precision.HIGHEST if x_ref.dtype == jnp.float32
            else jax.lax.Precision.DEFAULT)

    x = x_ref[0, 0]                         # ((TH+2)*W, 3*C)
    acc = jnp.zeros((m, cout_p), jnp.float32)
    # 3 fused dots (K = 3*C) instead of 9 tiny ones; slices are static sublane
    # offsets (multiples of W) on the leading dim -> no window-slice relayouts.
    for kh in range(3):
        lhs = x[kh * w_img: kh * w_img + m]               # (TH*W, 3*C)
        acc = acc + jnp.dot(lhs, w_ref[kh],
                            preferred_element_type=jnp.float32,
                            precision=prec)

    acc = acc + b_ref[...]                                 # bias before PReLU, f32
    alpha = a_ref[...]                                     # (1, Cout_p), broadcast
    out = jnp.where(acc >= 0.0, acc, acc * alpha)          # PReLU epilogue in f32
    o_ref[0, 0] = out.astype(o_ref.dtype)


def _pick_row_tile(h, w, c, cout_p, in_itemsize, budget_bytes=8 * 1024 * 1024):
    """Largest divisor TH of H whose double-buffered in+out blocks fit the budget,
    preferring >= 2 row tiles so v7x's second TensorCore has work when N == 1."""
    fitting = []
    for th in range(1, h + 1):
        if h % th:
            continue
        in_b = (th + 2) * w * (3 * c) * in_itemsize
        out_b = th * w * cout_p * 4
        if 2 * (in_b + out_b) <= budget_bytes:
            fitting.append(th)
    if not fitting:
        return 1
    multi = [th for th in fitting if h // th >= 2]
    return max(multi) if multi else max(fitting)


@functools.partial(jax.jit, static_argnames=("scale_factor", "compute_dtype"))
def upsample_block_pallas(x_nchw, weight, bias, alpha, *, scale_factor,
                          compute_dtype=jnp.bfloat16):
    """x_nchw: (N, C, H, W); weight: (C*r^2, C, 3, 3); bias: (C*r^2,); alpha: (C,)."""
    n, c, h, w = x_nchw.shape
    r = scale_factor
    cout = c * r * r
    assert weight.shape == (cout, c, 3, 3)
    cout_p = ((cout + LANES - 1) // LANES) * LANES        # lane-dense output channels
    itemsize = jnp.dtype(compute_dtype).itemsize

    # ---- layout glue (XLA): NCHW -> NHWC, zero pad, stack the 3 kw taps on channels.
    x_nhwc = jnp.transpose(x_nchw, (0, 2, 3, 1)).astype(compute_dtype)
    x_pad = jnp.pad(x_nhwc, ((0, 0), (1, 1), (1, 1), (0, 0)))      # (N, H+2, W+2, C)
    # column block kw*C + cc holds x_pad[:, :, w_col + kw, cc]
    x_kw = jnp.concatenate([x_pad[:, :, kw:kw + w, :] for kw in range(3)],
                           axis=-1)                                 # (N, H+2, W, 3C)

    th = _pick_row_tile(h, w, c, cout_p, itemsize)
    n_th = h // th
    m = th * w
    # Overlapping (2-row halo) row tiles, gathered once in the wrapper.
    # (pl.Element element-offset index maps could make this a zero-copy halo read.)
    row_idx = jnp.arange(n_th)[:, None] * th + jnp.arange(th + 2)[None, :]
    x_tiles = x_kw[:, row_idx].reshape(n, n_th, (th + 2) * w, 3 * c)

    # ---- weights / bias / PReLU slopes, padded to a lane-dense Cout_p.
    w_hwio = jnp.transpose(weight, (2, 3, 1, 0))                    # (3, 3, C, Cout)
    w_im2col = w_hwio.reshape(3, 3 * c, cout).astype(compute_dtype)  # row = kw*C + cc
    w_p = jnp.zeros((3, 3 * c, cout_p), compute_dtype).at[:, :, :cout].set(w_im2col)
    b_p = jnp.zeros((1, cout_p), jnp.float32).at[0, :cout].set(bias.astype(jnp.float32))
    alpha_exp = jnp.repeat(alpha.astype(jnp.float32), r * r)        # slope of conv ch k = alpha[k // r^2]
    a_p = jnp.zeros((1, cout_p), jnp.float32).at[0, :cout].set(alpha_exp)

    # ---- VMEM budget (explicit for v7x's 64 MiB; clamp to >= default 32 MiB).
    in_bytes = (th + 2) * w * 3 * c * itemsize
    out_bytes = m * cout_p * 4
    w_bytes = 3 * 3 * c * cout_p * itemsize
    need = 2 * (in_bytes + out_bytes) + w_bytes + 2 * cout_p * 4
    vmem_limit = int(min(max(4 * need, 32 * 1024 * 1024), 64 * 1024 * 1024))

    conv = pl.pallas_call(
        _upsample_kernel,
        out_shape=jax.ShapeDtypeStruct((n, n_th, m, cout_p), jnp.float32),
        grid_spec=pltpu.PrefetchScalarGridSpec(
            num_scalar_prefetch=0,
            grid=(n, n_th),
            in_specs=[
                pl.BlockSpec((1, 1, (th + 2) * w, 3 * c), lambda b, i: (b, i, 0, 0)),
                pl.BlockSpec((3, 3 * c, cout_p), lambda b, i: (0, 0, 0)),
                pl.BlockSpec((1, cout_p), lambda b, i: (0, 0)),
                pl.BlockSpec((1, cout_p), lambda b, i: (0, 0)),
            ],
            out_specs=pl.BlockSpec((1, 1, m, cout_p), lambda b, i: (b, i, 0, 0)),
        ),
        compiler_params=pltpu.CompilerParams(
            dimension_semantics=("parallel", "parallel"),
            vmem_limit_bytes=vmem_limit),
    )(x_tiles, w_p, b_p, a_p)

    # ---- layout glue (XLA): drop lane padding, un-tile, PixelShuffle, back to NCHW.
    conv = conv[..., :cout].reshape(n, h, w, cout)       # (N, H, W, C*r^2)
    ps = conv.reshape(n, h, w, c, r, r)                  # k = cc*r*r + dy*r + dx
    ps = jnp.transpose(ps, (0, 3, 1, 4, 2, 5))           # (N, C, H, dy, W, dx)
    return ps.reshape(n, c, h * r, w * r).astype(x_nchw.dtype)


def _reference(x_nchw, weight, bias, alpha, r):
    """Pure-JAX f32 reference mirroring the PyTorch module."""
    y = jax.lax.conv_general_dilated(
        x_nchw.astype(jnp.float32), weight.astype(jnp.float32),
        window_strides=(1, 1), padding=((1, 1), (1, 1)),
        dimension_numbers=("NCHW", "OIHW", "NCHW"),
        precision=jax.lax.Precision.HIGHEST)
    y = y + bias.astype(jnp.float32)[None, :, None, None]
    n, crr, h, w = y.shape
    c = crr // (r * r)
    ps = y.reshape(n, c, r, r, h, w)
    ps = jnp.transpose(ps, (0, 1, 4, 2, 5, 3)).reshape(n, c, h * r, w * r)
    a = alpha.astype(jnp.float32)[None, :, None, None]
    return jnp.where(ps >= 0.0, ps, ps * a)


if __name__ == "__main__":
    N, C, H, W = 2, 4, 16, 16
    r = 2
    Cout = C * r * r

    key = jax.random.PRNGKey(0)
    kx, kw_, kb, ka = jax.random.split(key, 4)
    x = jax.random.normal(kx, (N, C, H, W), dtype=jnp.float32)
    weight = jax.random.normal(kw_, (Cout, C, 3, 3), dtype=jnp.float32) * 0.1
    bias = jax.random.normal(kb, (Cout,), dtype=jnp.float32) * 0.1
    # PyTorch PReLU default init is 0.25 per parameter; perturb deterministically.
    alpha = 0.25 + 0.01 * jax.random.normal(ka, (C,), dtype=jnp.float32)

    ref = _reference(x, weight, bias, alpha, r)

    # Fast path: bf16 matmul inputs (v6e/v7x MXU), f32 accumulation + epilogue.
    out = upsample_block_pallas(x, weight, bias, alpha, scale_factor=r,
                                compute_dtype=jnp.bfloat16)
    out = jax.block_until_ready(out)
    assert out.shape == (N, C, H * r, W * r)
    assert jnp.allclose(out, ref, atol=5e-2, rtol=5e-2), "bf16 path mismatch"

    # Exact path: f32 end-to-end, matches the PyTorch module numerics tightly.
    out_f32 = upsample_block_pallas(x, weight, bias, alpha, scale_factor=r,
                                    compute_dtype=jnp.float32)
    out_f32 = jax.block_until_ready(out_f32)
    assert jnp.allclose(out_f32, ref, atol=1e-4, rtol=1e-4), "f32 path mismatch"

    print("KERNEL_OK")
</pallas_src>

<mosaic_0001>
module attributes {stable_mosaic.version = 11 : i64} {
  func.func @_upsample_kernel(%arg0: i32, %arg1: i32, %arg2: memref<1x1x160x12xbf16, #tpu.memory_space<vmem>>, %arg3: memref<3x12x128xbf16, #tpu.memory_space<vmem>>, %arg4: memref<1x128xf32, #tpu.memory_space<vmem>>, %arg5: memref<1x128xf32, #tpu.memory_space<vmem>>, %arg6: memref<1x1x128x128xf32, #tpu.memory_space<vmem>>) attributes {dimension_semantics = [#tpu.dimension_semantics<parallel>, #tpu.dimension_semantics<parallel>], iteration_bounds = array<i64: 2, 2>, scalar_prefetch = 0 : i64, scratch_operands = 0 : i64, tpu.core_type = #tpu.core_type<tc>, window_params = [{transform_indices = @transform_0, window_bounds = array<i64: 1, 1, 160, 12>}, {pipeline_mode = #tpu.pipeline_mode<synchronous>, transform_indices = @transform_1, window_bounds = array<i64: 3, 12, 128>}, {pipeline_mode = #tpu.pipeline_mode<synchronous>, transform_indices = @transform_2, window_bounds = array<i64: 1, 128>}, {pipeline_mode = #tpu.pipeline_mode<synchronous>, transform_indices = @transform_3, window_bounds = array<i64: 1, 128>}, {transform_indices = @transform_4, window_bounds = array<i64: 1, 1, 128, 128>}]} {
    %c0 = arith.constant 0 : index
    %c0_0 = arith.constant 0 : index
    %c0_1 = arith.constant 0 : index
    %c0_2 = arith.constant 0 : index
    %0 = vector.load %arg2[%c0, %c0_0, %c0_1, %c0_2] : memref<1x1x160x12xbf16, #tpu.memory_space<vmem>>, vector<1x1x160x12xbf16>
    %1 = vector.shape_cast %0 : vector<1x1x160x12xbf16> to vector<160x12xbf16>
    %cst = arith.constant 0.000000e+00 : f32
    %2 = vector.broadcast %cst : f32 to vector<128x128xf32>
    %3 = vector.extract_strided_slice %1 {offsets = [0, 0], sizes = [128, 12], strides = [1, 1]} : vector<160x12xbf16> to vector<128x12xbf16>
    %c0_3 = arith.constant 0 : index
    %c0_4 = arith.constant 0 : index
    %c0_5 = arith.constant 0 : index
    %4 = vector.load %arg3[%c0_3, %c0_4, %c0_5] : memref<3x12x128xbf16, #tpu.memory_space<vmem>>, vector<1x12x128xbf16>
    %5 = vector.shape_cast %4 : vector<1x12x128xbf16> to vector<12x128xbf16>
    %cst_6 = arith.constant dense<0.000000e+00> : vector<128x128xf32>
    %6 = tpu.matmul %3, %5, %cst_6 {dimension_numbers = #tpu.dot_dimension_numbers<[1], [0], [0], [1], [0, 0, 1, 1], [], []>} : vector<128x12xbf16>, vector<12x128xbf16>, vector<128x128xf32> -> vector<128x128xf32>
    %7 = arith.addf %2, %6 : vector<128x128xf32>
    %8 = vector.extract_strided_slice %1 {offsets = [16, 0], sizes = [128, 12], strides = [1, 1]} : vector<160x12xbf16> to vector<128x12xbf16>
    %c1 = arith.constant 1 : index
    %c0_7 = arith.constant 0 : index
    %c0_8 = arith.constant 0 : index
    %9 = vector.load %arg3[%c1, %c0_7, %c0_8] : memref<3x12x128xbf16, #tpu.memory_space<vmem>>, vector<1x12x128xbf16>
    %10 = vector.shape_cast %9 : vector<1x12x128xbf16> to vector<12x128xbf16>
    %cst_9 = arith.constant dense<0.000000e+00> : vector<128x128xf32>
    %11 = tpu.matmul %8, %10, %cst_9 {dimension_numbers = #tpu.dot_dimension_numbers<[1], [0], [0], [1], [0, 0, 1, 1], [], []>} : vector<128x12xbf16>, vector<12x128xbf16>, vector<128x128xf32> -> vector<128x128xf32>
    %12 = arith.addf %7, %11 : vector<128x128xf32>
    %13 = vector.extract_strided_slice %1 {offsets = [32, 0], sizes = [128, 12], strides = [1, 1]} : vector<160x12xbf16> to vector<128x12xbf16>
    %c2 = arith.constant 2 : index
    %c0_10 = arith.constant 0 : index
    %c0_11 = arith.constant 0 : index
    %14 = vector.load %arg3[%c2, %c0_10, %c0_11] : memref<3x12x128xbf16, #tpu.memory_space<vmem>>, vector<1x12x128xbf16>
    %15 = vector.shape_cast %14 : vector<1x12x128xbf16> to vector<12x128xbf16>
    %cst_12 = arith.constant dense<0.000000e+00> : vector<128x128xf32>
    %16 = tpu.matmul %13, %15, %cst_12 {dimension_numbers = #tpu.dot_dimension_numbers<[1], [0], [0], [1], [0, 0, 1, 1], [], []>} : vector<128x12xbf16>, vector<12x128xbf16>, vector<128x128xf32> -> vector<128x128xf32>
    %17 = arith.addf %12, %16 : vector<128x128xf32>
    %c0_13 = arith.constant 0 : index
    %c0_14 = arith.constant 0 : index
    %18 = vector.load %arg4[%c0_13, %c0_14] : memref<1x128xf32, #tpu.memory_space<vmem>>, vector<1x128xf32>
    %19 = vector.broadcast %18 : vector<1x128xf32> to vector<128x128xf32>
    %20 = arith.addf %17, %19 : vector<128x128xf32>
    %c0_15 = arith.constant 0 : index
    %c0_16 = arith.constant 0 : index
    %21 = vector.load %arg5[%c0_15, %c0_16] : memref<1x128xf32, #tpu.memory_space<vmem>>, vector<1x128xf32>
    %cst_17 = arith.constant 0.000000e+00 : f32
    %22 = vector.broadcast %cst_17 : f32 to vector<128x128xf32>
    %23 = arith.cmpf oge, %20, %22 : vector<128x128xf32>
    %24 = vector.broadcast %21 : vector<1x128xf32> to vector<128x128xf32>
    %25 = arith.mulf %20, %24 : vector<128x128xf32>
    %26 = arith.select %23, %20, %25 : vector<128x128xi1>, vector<128x128xf32>
    %c0_18 = arith.constant 0 : index
    %c0_19 = arith.constant 0 : index
    %c0_20 = arith.constant 0 : index
    %c0_21 = arith.constant 0 : index
    %27 = vector.load %arg6[%c0_18, %c0_19, %c0_20, %c0_21] : memref<1x1x128x128xf32, #tpu.memory_space<vmem>>, vector<1x1x128x128xf32>
    %28 = vector.shape_cast %27 : vector<1x1x128x128xf32> to vector<128x128xf32>
    %29 = vector.shape_cast %26 : vector<128x128xf32> to vector<1x1x128x128xf32>
    tpu.vector_store %arg6[%c0_18, %c0_19, %c0_20, %c0_21], %29 {strides = array<i32>} : memref<1x1x128x128xf32, #tpu.memory_space<vmem>>, vector<1x1x128x128xf32>,
    return
  }
  func.func @transform_0(%arg0: i32, %arg1: i32) -> (i32, i32, i32, i32) {
    %c0_i32 = arith.constant 0 : i32
    %c0_i32_0 = arith.constant 0 : i32
    %c0_i32_1 = arith.constant 0 : i32
    return %arg0, %arg1, %c0_i32, %c0_i32_0 : i32, i32, i32, i32
  }
  func.func @transform_1(%arg0: i32, %arg1: i32) -> (i32, i32, i32) {
    %c0_i32 = arith.constant 0 : i32
    %c0_i32_0 = arith.constant 0 : i32
    %c0_i32_1 = arith.constant 0 : i32
    %c0_i32_2 = arith.constant 0 : i32
    return %c0_i32, %c0_i32_0, %c0_i32_1 : i32, i32, i32
  }
  func.func @transform_2(%arg0: i32, %arg1: i32) -> (i32, i32) {
    %c0_i32 = arith.constant 0 : i32
    %c0_i32_0 = arith.constant 0 : i32
    %c0_i32_1 = arith.constant 0 : i32
    return %c0_i32, %c0_i32_0 : i32, i32
  }
  func.func @transform_3(%arg0: i32, %arg1: i32) -> (i32, i32) {
    %c0_i32 = arith.constant 0 : i32
    %c0_i32_0 = arith.constant 0 : i32
    %c0_i32_1 = arith.constant 0 : i32
    return %c0_i32, %c0_i32_0 : i32, i32
  }
  func.func @transform_4(%arg0: i32, %arg1: i32) -> (i32, i32, i32, i32) {
    %c0_i32 = arith.constant 0 : i32
    %c0_i32_0 = arith.constant 0 : i32
    %c0_i32_1 = arith.constant 0 : i32
    return %arg0, %arg1, %c0_i32, %c0_i32_0 : i32, i32, i32, i32
  }
}

</mosaic_0001>

<llo_original>
// kernel: upsample_block_pallas.1
$region0: #{upsample_block_pallas.1}
  #allocation0 [shape = 'u32[]', space=smem, size = 0x4, offset = 0x4, fixed_abs, tag = 'smem constant byte address 0x4 - core index']
  #allocation1 [shape = 'u32[144,128]{1,0:T(1,128)}', space=vmem, size = 0x12000, scoped, tag = 'internal scratch']
  %s0 = inlined_call_operand.vmem [shape: bf16[2,2,160,12], index: 0, kind: input, shape index: {}]
  %s1 = inlined_call_operand.vmem [shape: bf16[3,12,128], index: 1, kind: input, shape index: {}]
  %s2 = inlined_call_operand.vmem [shape: f32[1,128], index: 2, kind: input, shape index: {}]
  %s3 = inlined_call_operand.vmem [shape: f32[1,128], index: 3, kind: input, shape index: {}]
  %s4 = inlined_call_operand.vmem [shape: f32[2,2,128,128], index: 4, kind: output, shape index: {}]
  %s5 = sld [smem:[#allocation0]]
  $region49: #{upsample_block_pallas.1} parent=0
    _
  %s7 = ssub.s32 1, %s5
  %s8 = scalar_select 0, %s7, %s5
  loop: start=0, step=1, limit=6
  $region2: #{upsample_block_pallas.1} parent=0 // loop_pre_header
    _
  $region3: #{upsample_block_pallas.1} parent=0 // loop_header
    %s10 = sphi 0, %s14
    %p11 = scmp.ge.s32.totalorder %s10, 6
    %s17 = sphi 0, %s29
    %s18 = sphi 0, %s25
    %s19 = sphi 0, %s17
    %s20 = sphi 0, %s18
    %s21 = sphi 0, %s19
    %s22 = sphi 0, %s20
    %s34 = sphi 0, %s36
    %s37 = sphi 0, %s34
    %s38 = sphi 0, %s37
    %s54 = sphi 0, %s38
    %s58 = sphi 0, %s58
    %s60 = sphi 0, %s58
    %s61 = sphi 0, %s60
    %s75 = sphi 0, %s61
    %s79 = sphi 0, %s79
    %s81 = sphi 0, %s79
    %s82 = sphi 0, %s81
    %s96 = sphi 0, %s82
    %s100 = sphi 0, %s100
    %s102 = sphi 0, %s100
    %s103 = sphi 0, %s102
    %s117 = sphi 0, %s103
    %s125 = sphi 0, %s127
    %s128 = sphi 0, %s125
    %s129 = sphi 0, %s128
    %s145 = sphi 0, %s129
  $region4: #{upsample_block_pallas.1} parent=0 // loop_header_branch
    %13 = sbr.rel (%p11) target = $region8
  $region5: #{upsample_block_pallas.1} parent=0 // loop_body
    %s15 = ssub.s32 %s10, 1
    %s16 = ssub.s32 %s10, 2
    %s23 = sadd.s32 1, %s18
    %p24 = scmp.ge.s32.totalorder %s23, 2
    %s25 = scalar_select %p24, 0, %s23
    %s26 = sadd.s32 1, %s17
    %s27 = scalar_select %p24, %s26, %s17
    %p28 = scmp.ge.s32.totalorder %s27, 2
    %s29 = scalar_select %p28, 0, %s27
    %s30 = ssub.s32 %s17, %s29
    %s31 = ssub.s32 %s18, %s25
    %s32 = sor.u32 %s30, %s31
    %p33 = scmp.eq.s32.totalorder %s32, 0
    %s35 = sadd.s32 %s34, 1
    %s36 = scalar_select %p33, %s34, %s35
    %p39 = pneg %p33
    %p40 = scmp.eq.s32.totalorder %s10, 3
    %p41 = por %p39, %p40
    %p42 = scmp.ne.s32.totalorder %s34, %s37
    %p43 = scmp.eq.s32.totalorder %s10, 0
    %p44 = por %p42, %p43
    %p45 = scmp.ne.s32.totalorder %s34, %s37
    %p46 = scmp.eq.s32.totalorder %s15, 3
    %p47 = por %p45, %p46
    %p48 = scmp.ne.s32.totalorder %s37, %s38
    %p49 = scmp.eq.s32.totalorder %s15, 0
    %p50 = por %p48, %p49
    %p51 = scmp.ne.s32.totalorder %s37, %s38
    %p52 = scmp.eq.s32.totalorder %s16, 3
    %p53 = por %p51, %p52
    %p55 = scmp.ne.s32.totalorder %s38, %s54
    %p56 = scmp.eq.s32.totalorder %s16, 0
    %p57 = por %p55, %p56
    %s59 = sadd.s32 %s58, 1
    %p62 = scmp.eq.s32.totalorder %s10, 3
    %p63 = scmp.ne.s32.totalorder %s58, %s60
    %p64 = scmp.eq.s32.totalorder %s10, 0
    %p65 = por %p63, %p64
    %p66 = scmp.ne.s32.totalorder %s58, %s60
    %p67 = scmp.eq.s32.totalorder %s15, 3
    %p68 = por %p66, %p67
    %p69 = scmp.ne.s32.totalorder %s60, %s61
    %p70 = scmp.eq.s32.totalorder %s15, 0
    %p71 = por %p69, %p70
    %p72 = scmp.ne.s32.totalorder %s60, %s61
    %p73 = scmp.eq.s32.totalorder %s16, 3
    %p74 = por %p72, %p73
    %p76 = scmp.ne.s32.totalorder %s61, %s75
    %p77 = scmp.eq.s32.totalorder %s16, 0
    %p78 = por %p76, %p77
    %s80 = sadd.s32 %s79, 1
    %p83 = scmp.eq.s32.totalorder %s10, 3
    %p84 = scmp.ne.s32.totalorder %s79, %s81
    %p85 = scmp.eq.s32.totalorder %s10, 0
    %p86 = por %p84, %p85
    %p87 = scmp.ne.s32.totalorder %s79, %s81
    %p88 = scmp.eq.s32.totalorder %s15, 3
    %p89 = por %p87, %p88
    %p90 = scmp.ne.s32.totalorder %s81, %s82
    %p91 = scmp.eq.s32.totalorder %s15, 0
    %p92 = por %p90, %p91
    %p93 = scmp.ne.s32.totalorder %s81, %s82
    %p94 = scmp.eq.s32.totalorder %s16, 3
    %p95 = por %p93, %p94
    %p97 = scmp.ne.s32.totalorder %s82, %s96
    %p98 = scmp.eq.s32.totalorder %s16, 0
    %p99 = por %p97, %p98
    %s101 = sadd.s32 %s100, 1
    %p104 = scmp.eq.s32.totalorder %s10, 3
    %p105 = scmp.ne.s32.totalorder %s100, %s102
    %p106 = scmp.eq.s32.totalorder %s10, 0
    %p107 = por %p105, %p106
    %p108 = scmp.ne.s32.totalorder %s100, %s102
    %p109 = scmp.eq.s32.totalorder %s15, 3
    %p110 = por %p108, %p109
    %p111 = scmp.ne.s32.totalorder %s102, %s103
    %p112 = scmp.eq.s32.totalorder %s15, 0
    %p113 = por %p111, %p112
    %p114 = scmp.ne.s32.totalorder %s102, %s103
    %p115 = scmp.eq.s32.totalorder %s16, 3
    %p116 = por %p114, %p115
    %p118 = scmp.ne.s32.totalorder %s103, %s117
    %p119 = scmp.eq.s32.totalorder %s16, 0
    %p120 = por %p118, %p119
    %s121 = ssub.s32 %s17, %s29
    %s122 = ssub.s32 %s18, %s25
    %s123 = sor.u32 %s121, %s122
    %p124 = scmp.eq.s32.totalorder %s123, 0
    %s126 = sadd.s32 %s125, 1
    %s127 = scalar_select %p124, %s125, %s126
    %p130 = pneg %p124
    %p131 = scmp.eq.s32.totalorder %s10, 3
    %p132 = por %p130, %p131
    %p133 = scmp.ne.s32.totalorder %s125, %s128
    %p134 = scmp.eq.s32.totalorder %s10, 0
    %p135 = por %p133, %p134
    %p136 = scmp.ne.s32.totalorder %s125, %s128
    %p137 = scmp.eq.s32.totalorder %s15, 3
    %p138 = por %p136, %p137
    %p139 = scmp.ne.s32.totalorder %s128, %s129
    %p140 = scmp.eq.s32.totalorder %s15, 0
    %p141 = por %p139, %p140
    %p142 = scmp.ne.s32.totalorder %s128, %s129
    %p143 = scmp.eq.s32.totalorder %s16, 3
    %p144 = por %p142, %p143
    %p146 = scmp.ne.s32.totalorder %s129, %s145
    %p147 = scmp.eq.s32.totalorder %s16, 0
    %p148 = por %p146, %p147
    %p149 = scmp.le.s32.totalorder 1, %s10
    %p150 = scmp.lt.s32.totalorder %s10, 5
    %p151 = pnand %p149, %p150
    %p152 = pneg %p151
    // Predicated region
    $region9: #{upsample_block_pallas.1} parent=5 // pred_check
      _
    $region10: #{upsample_block_pallas.1} parent=5 // pred_check_branch
      %154 = sbr.rel (%p151) target = $region12
    $region11: #{upsample_block_pallas.1} parent=5 // pred_region
      %s155 = ssub.s32 %s10, 1
      // Predicated region
      $region13: #{upsample_block_pallas.1} parent=11 // pred_check
        %p156 = pneg %p71
      $region14: #{upsample_block_pallas.1} parent=11 // pred_check_branch
        %158 = sbr.rel (%p156) target = $region16
      $region15: #{upsample_block_pallas.1} parent=11 // pred_region
        _
      $region16: #{upsample_block_pallas.1} parent=11 // pred_fallthru
        _
      // Predicated region
      $region17: #{upsample_block_pallas.1} parent=11 // pred_check
        %p159 = pneg %p92
      $region18: #{upsample_block_pallas.1} parent=11 // pred_check_branch
        %161 = sbr.rel (%p159) target = $region20
      $region19: #{upsample_block_pallas.1} parent=11 // pred_region
        _
      $region20: #{upsample_block_pallas.1} parent=11 // pred_fallthru
        _
      // Predicated region
      $region21: #{upsample_block_pallas.1} parent=11 // pred_check
        %p162 = pneg %p113
      $region22: #{upsample_block_pallas.1} parent=11 // pred_check_branch
        %164 = sbr.rel (%p162) target = $region24
      $region23: #{upsample_block_pallas.1} parent=11 // pred_region
        _
      $region24: #{upsample_block_pallas.1} parent=11 // pred_fallthru
        _
    $region12: #{upsample_block_pallas.1} parent=5 // pred_fallthru
      _
    %p165 = scmp.lt.s32.totalorder %s10, 4
    // Predicated region
    $region25: #{upsample_block_pallas.1} parent=5 // pred_check
      %p166 = pneg %p165
    $region26: #{upsample_block_pallas.1} parent=5 // pred_check_branch
      %168 = sbr.rel (%p166) target = $region28
    $region27: #{upsample_block_pallas.1} parent=5 // pred_region
      // Predicated region
      $region29: #{upsample_block_pallas.1} parent=27 // pred_check
        %p169 = pneg %p44
      $region30: #{upsample_block_pallas.1} parent=27 // pred_check_branch
        %171 = sbr.rel (%p169) target = $region32
      $region31: #{upsample_block_pallas.1} parent=27 // pred_region
        %p172 = scmp.lt.s32.totalorder %s17, 1
        %s173 = scalar_select %p172, %s17, 1
        %p174 = scmp.lt.s32.totalorder %s18, 1
        %s175 = scalar_select %p174, %s18, 1
        %s176 = smul.addr %s175, 20
        %s177 = smul.addr %s173, 40
        %s178 = sadd.s32 %s176, %s177
        %s179 = smul.addr %s178, 4
        %s180 = scalar_lea.vmem %s0, %s179
      $region32: #{upsample_block_pallas.1} parent=27 // pred_fallthru
        _
    $region28: #{upsample_block_pallas.1} parent=5 // pred_fallthru
      _
    %p181 = scmp.le.s32.totalorder 1, %s10
    %p182 = scmp.lt.s32.totalorder %s10, 5
    %p183 = pnand %p181, %p182
    %p184 = pneg %p183
    // Predicated region
    $region33: #{upsample_block_pallas.1} parent=5 // pred_check
      _
    $region34: #{upsample_block_pallas.1} parent=5 // pred_check_branch
      %186 = sbr.rel (%p183) target = $region36
    $region35: #{upsample_block_pallas.1} parent=5 // pred_region
      %s187 = ssub.s32 %s10, 1
      %p188 = scmp.lt.s32.totalorder %s19, 1
      %s189 = scalar_select %p188, %s19, 1
      %p190 = scmp.lt.s32.totalorder %s20, 1
      %s191 = scalar_select %p190, %s20, 1
      %s192 = smul.addr %s191, 20
      %s193 = smul.addr %s189, 40
      %s194 = sadd.s32 %s192, %s193
      %s195 = smul.addr %s194, 4
      %s196 = scalar_lea.vmem %s0, %s195
      %p197 = pneg %p50
      %p198 = pneg %p47
      %p199 = pneg %p71
      %p200 = pneg %p68
      %p201 = pneg %p92
      %p202 = pneg %p89
      %p203 = pneg %p113
      %p204 = pneg %p110
      %p205 = pneg %p141
      %p206 = pneg %p138
      %p207 = scmp.lt.s32.totalorder %s19, 1
      %s208 = scalar_select %p207, %s19, 1
      %p209 = scmp.lt.s32.totalorder %s20, 1
      %s210 = scalar_select %p209, %s20, 1
      %s211 = smul.addr %s210, 16
      %s212 = smul.addr %s208, 32
      %s213 = sadd.s32 %s211, %s212
      %s214 = smul.addr %s213, 8
      %s215 = scalar_lea.vmem %s4, %s214
      %p216 = scmp.lt.s32.totalorder %s19, 1
      %s217 = scalar_select %p216, %s19, 1
      %p218 = scmp.lt.s32.totalorder %s20, 1
      %s219 = scalar_select %p218, %s20, 1
      %s220 = smul.addr %s219, 20
      %s221 = smul.addr %s217, 40
      %s222 = sadd.s32 %s220, %s221
      %s223 = smul.addr %s222, 4
      %s224 = scalar_lea.vmem %s0, %s223
      %p225 = scmp.lt.s32.totalorder %s19, 1
      %s226 = scalar_select %p225, %s19, 1
      %p227 = scmp.lt.s32.totalorder %s20, 1
      %s228 = scalar_select %p227, %s20, 1
      %s229 = smul.addr %s228, 16
      %s230 = smul.addr %s226, 32
      %s231 = sadd.s32 %s229, %s230
      %s232 = smul.addr %s231, 8
      %s233 = scalar_lea.vmem %s4, %s232
      %v235 = vld [vmem:[%s224] sm:$0xf]
      %v236 = vld [vmem:[%s224 + $0x4] sm:$0xf]
      %v237 = vld [vmem:[%s224 + $0x8] sm:$0xf]
      %v238 = vld [vmem:[%s224 + $0xc] sm:$0xf]
      %v239 = vld [vmem:[%s224 + $0x10] sm:$0xf]
      %v240 = vld [vmem:[%s224 + $0x14] sm:$0xf]
      %v241 = vld [vmem:[%s224 + $0x18] sm:$0xf]
      %v242 = vld [vmem:[%s224 + $0x1c] sm:$0xf]
      %v243 = vld [vmem:[%s224 + $0x20] sm:$0xf]
      %v244 = vld [vmem:[%s224 + $0x24] sm:$0xf]
      %v245 = vld [vmem:[%s224 + $0x28] sm:$0xf]
      %v246 = vld [vmem:[%s224 + $0x2c] sm:$0xf]
      %v247 = vld [vmem:[%s224 + $0x30] sm:$0xf]
      %v248 = vld [vmem:[%s224 + $0x34] sm:$0xf]
      %v249 = vld [vmem:[%s224 + $0x38] sm:$0xf]
      %v250 = vld [vmem:[%s224 + $0x3c] sm:$0xf]
      %v251 = vld [vmem:[%s224 + $0x40] sm:$0xf]
      %v252 = vld [vmem:[%s224 + $0x44] sm:$0xf]
      %v253 = vld [vmem:[%s224 + $0x48] sm:$0xf]
      %v254 = vld [vmem:[%s224 + $0x4c] sm:$0xf]
      %v255 = vld [vmem:[%s1] sm:$0xf]
      %v256 = vld [vmem:[%s1 + $0x4] sm:$0x3]
      %s257 = scalar_lea.vmem %s1, 8
      %v258 = vld [vmem:[%s257] sm:$0xf]
      %v259 = vld [vmem:[%s257 + $0x4] sm:$0x3]
      %v276 = vunpack.c.l.b16 %v237
      %v277 = vunpack.c.l.b16 %v238
      %v278 = vunpack.c.l.b16 %v239
      %v279 = vunpack.c.l.b16 %v240
      %v280 = vunpack.c.l.b16 %v241
      %v281 = vunpack.c.l.b16 %v242
      %v282 = vunpack.c.l.b16 %v243
      %v283 = vunpack.c.l.b16 %v244
      %v284 = vunpack.c.l.b16 %v245
      %v285 = vunpack.c.l.b16 %v246
      %v286 = vunpack.c.l.b16 %v247
      %v287 = vunpack.c.l.b16 %v248
      %v288 = vunpack.c.l.b16 %v249
      %v289 = vunpack.c.l.b16 %v250
      %v290 = vunpack.c.l.b16 %v251
      %v291 = vunpack.c.l.b16 %v252
      %v292 = vpack.c.b16 %v277, %v276
      %v293 = vpack.c.b16 %v279, %v278
      %v294 = vpack.c.b16 %v281, %v280
      %v295 = vpack.c.b16 %v283, %v282
      %v296 = vpack.c.b16 %v285, %v284
      %v297 = vpack.c.b16 %v287, %v286
      %v298 = vpack.c.b16 %v289, %v288
      %v299 = vpack.c.b16 %v291, %v290
      %v302 = vunpack.c.l.b16 %v258
      %v303 = vunpack.c.l.b16 %v259
      %v304 = vpack.c.b16 %v303, %v302
      %vm305 = vcmask 97280
      %v307 = vsel %vm305, %v292, 0
      %v310 = vsel %vm305, %v293, 0
      %v313 = vsel %vm305, %v294, 0
      %v316 = vsel %vm305, %v295, 0
      %v319 = vsel %vm305, %v296, 0
      %v322 = vsel %vm305, %v297, 0
      %v325 = vsel %vm305, %v298, 0
      %v328 = vsel %vm305, %v299, 0
      %vm330 = vcmask 1045504
      %v332 = vsel %vm330, %v304, 0
      %334 = vmatprep.subr.bf16.mxu0 0
      %335 = vmatpush1.bf16.msra.mxu0 %v332
      %336 = vmatprep.subr.bf16.mxu0 0
      %337 = vmatpush1.bf16.msra.mxu0 0
      %338 = vmatprep.subr.bf16.mxu0 0
      %339 = vmatpush1.bf16.msra.mxu0 0
      %340 = vmatprep.subr.bf16.mxu0 0
      %341 = vmatpush1.bf16.msra.mxu0 0
      %342 = vmatprep.subr.bf16.mxu0 0
      %343 = vmatpush1.bf16.msra.mxu0 0
      %344 = vmatprep.subr.bf16.mxu0 0
      %345 = vmatpush1.bf16.msra.mxu0 0
      %346 = vmatprep.subr.bf16.mxu0 0
      %347 = vmatpush1.bf16.msra.mxu0 0
      %348 = vmatprep.subr.bf16.mxu0 0
      %349 = vmatpush1.bf16.msra.mxu0 0
      %350 = vmatprep.subr.bf16.mxu0 0
      %351 = vmatpush1.bf16.msra.mxu0 0
      %352 = vmatprep.subr.bf16.mxu0 0
      %353 = vmatpush1.bf16.msra.mxu0 0
      %354 = vmatprep.subr.bf16.mxu0 0
      %355 = vmatpush1.bf16.msra.mxu0 0
      %356 = vmatprep.subr.bf16.mxu0 0
      %357 = vmatpush1.bf16.msra.mxu0 0
      %358 = vmatprep.subr.bf16.mxu0 0
      %359 = vmatpush1.bf16.msra.mxu0 0
      %360 = vmatprep.subr.bf16.mxu0 0
      %361 = vmatpush1.bf16.msra.mxu0 0
      %362 = vmatprep.subr.bf16.mxu0 0
      %363 = vmatpush1.bf16.msra.mxu0 0
      %364 = vmatprep.subr.bf16.mxu0 0
      %365 = vmatpush1.bf16.msra.mxu0 0
      %366 = vmatprep.mubr.bf16.mxu0 0
      %367 = vmatmul.mubr.bf16.gmra.mrb[0].mxu0 %v307
      %v368 = vpop.f32.mrb[0].mxu0
      %v369 = vadd.f32 0.0, %v368
      %v370 = vpop.f32.mrb[0].mxu0
      %v371 = vpop.f32.mrb[0].mxu0
      %v372 = vadd.f32 0.0, %v371
      %v373 = vpop.f32.mrb[0].mxu0
      %374 = vmatprep.mubr.bf16.mxu0 0
      %375 = vmatmul.mubr.bf16.gmra.mrb[0].mxu0 %v310
      %v376 = vpop.f32.mrb[0].mxu0
      %v377 = vadd.f32 0.0, %v376
      %v378 = vpop.f32.mrb[0].mxu0
      %v379 = vpop.f32.mrb[0].mxu0
      %v380 = vadd.f32 0.0, %v379
      %v381 = vpop.f32.mrb[0].mxu0
      %382 = vmatprep.mubr.bf16.mxu0 0
      %383 = vmatmul.mubr.bf16.gmra.mrb[0].mxu0 %v313
      %v384 = vpop.f32.mrb[0].mxu0
      %v385 = vadd.f32 0.0, %v384
      %v386 = vpop.f32.mrb[0].mxu0
      %v387 = vpop.f32.mrb[0].mxu0
      %v388 = vadd.f32 0.0, %v387
      %v389 = vpop.f32.mrb[0].mxu0
      %390 = vmatprep.mubr.bf16.mxu0 0
      %391 = vmatmul.mubr.bf16.gmra.mrb[0].mxu0 %v316
      %v392 = vpop.f32.mrb[0].mxu0
      %v393 = vadd.f32 0.0, %v392
      %v394 = vpop.f32.mrb[0].mxu0
      %v395 = vpop.f32.mrb[0].mxu0
      %v396 = vadd.f32 0.0, %v395
      %v397 = vpop.f32.mrb[0].mxu0
      %398 = vmatprep.mubr.bf16.mxu0 0
      %399 = vmatmul.mubr.bf16.gmra.mrb[0].mxu0 %v319
      %v400 = vpop.f32.mrb[0].mxu0
      %v401 = vadd.f32 0.0, %v400
      %v402 = vpop.f32.mrb[0].mxu0
      %v403 = vpop.f32.mrb[0].mxu0
      %v404 = vadd.f32 0.0, %v403
      %v405 = vpop.f32.mrb[0].mxu0
      %406 = vmatprep.mubr.bf16.mxu0 0
      %407 = vmatmul.mubr.bf16.gmra.mrb[0].mxu0 %v322
      %v408 = vpop.f32.mrb[0].mxu0
      %v409 = vadd.f32 0.0, %v408
      %v410 = vpop.f32.mrb[0].mxu0
      %v411 = vpop.f32.mrb[0].mxu0
      %v412 = vadd.f32 0.0, %v411
      %v413 = vpop.f32.mrb[0].mxu0
      %414 = vmatprep.mubr.bf16.mxu0 0
      %415 = vmatmul.mubr.bf16.gmra.mrb[0].mxu0 %v325
      %v416 = vpop.f32.mrb[0].mxu0
      %v417 = vadd.f32 0.0, %v416
      %v418 = vpop.f32.mrb[0].mxu0
      %v419 = vpop.f32.mrb[0].mxu0
      %v420 = vadd.f32 0.0, %v419
      %v421 = vpop.f32.mrb[0].mxu0
      %422 = vmatprep.mubr.bf16.mxu0 0
      %423 = vmatmul.mubr.bf16.gmra.mrb[0].mxu0 %v328
      %v424 = vpop.f32.mrb[0].mxu0
      %v425 = vadd.f32 0.0, %v424
      %v426 = vpop.f32.mrb[0].mxu0
      %v427 = vpop.f32.mrb[0].mxu0
      %v428 = vadd.f32 0.0, %v427
      %v429 = vpop.f32.mrb[0].mxu0
      %430 = vdwg.mxu0
      %v433 = vunpack.c.l.b16 %v235
      %v434 = vunpack.c.l.b16 %v236
      %v435 = vpack.c.b16 %v434, %v433
      %v438 = vunpack.c.l.b16 %v255
      %v439 = vunpack.c.l.b16 %v256
      %v440 = vpack.c.b16 %v439, %v438
      %v442 = vsel %vm305, %v435, 0
      %v445 = vsel %vm330, %v440, 0
      %447 = vmatprep.subr.bf16.mxu0 0
      %448 = vmatpush1.bf16.msra.mxu0 %v445
      %449 = vmatprep.subr.bf16.mxu0 0
      %450 = vmatpush1.bf16.msra.mxu0 0
      %451 = vmatprep.subr.bf16.mxu0 0
      %452 = vmatpush1.bf16.msra.mxu0 0
      %453 = vmatprep.subr.bf16.mxu0 0
      %454 = vmatpush1.bf16.msra.mxu0 0
      %455 = vmatprep.subr.bf16.mxu0 0
      %456 = vmatpush1.bf16.msra.mxu0 0
      %457 = vmatprep.subr.bf16.mxu0 0
      %458 = vmatpush1.bf16.msra.mxu0 0
      %459 = vmatprep.subr.bf16.mxu0 0
      %460 = vmatpush1.bf16.msra.mxu0 0
      %461 = vmatprep.subr.bf16.mxu0 0
      %462 = vmatpush1.bf16.msra.mxu0 0
      %463 = vmatprep.subr.bf16.mxu0 0
      %464 = vmatpush1.bf16.msra.mxu0 0
      %465 = vmatprep.subr.bf16.mxu0 0
      %466 = vmatpush1.bf16.msra.mxu0 0
      %467 = vmatprep.subr.bf16.mxu0 0
      %468 = vmatpush1.bf16.msra.mxu0 0
      %469 = vmatprep.subr.bf16.mxu0 0
      %470 = vmatpush1.bf16.msra.mxu0 0
      %471 = vmatprep.subr.bf16.mxu0 0
      %472 = vmatpush1.bf16.msra.mxu0 0
      %473 = vmatprep.subr.bf16.mxu0 0
      %474 = vmatpush1.bf16.msra.mxu0 0
      %475 = vmatprep.subr.bf16.mxu0 0
      %476 = vmatpush1.bf16.msra.mxu0 0
      %477 = vmatprep.subr.bf16.mxu0 0
      %478 = vmatpush1.bf16.msra.mxu0 0
      %479 = vmatprep.mubr.bf16.mxu0 0
      %480 = vmatmul.mubr.bf16.gmra.mrb[0].mxu0 %v442
      %v481 = vpop.f32.mrb[0].mxu0
      %v482 = vadd.f32 %v369, %v481
      %v483 = vpop.f32.mrb[0].mxu0
      %v484 = vpop.f32.mrb[0].mxu0
      %v485 = vadd.f32 %v372, %v484
      %v486 = vpop.f32.mrb[0].mxu0
      %487 = vmatprep.mubr.bf16.mxu0 0
      %488 = vmatmul.mubr.bf16.gmra.mrb[0].mxu0 %v307
      %v489 = vpop.f32.mrb[0].mxu0
      %v490 = vadd.f32 %v377, %v489
      %v491 = vpop.f32.mrb[0].mxu0
      %v492 = vpop.f32.mrb[0].mxu0
      %v493 = vadd.f32 %v380, %v492
      %v494 = vpop.f32.mrb[0].mxu0
      %495 = vmatprep.mubr.bf16.mxu0 0
      %496 = vmatmul.mubr.bf16.gmra.mrb[0].mxu0 %v310
      %v497 = vpop.f32.mrb[0].mxu0
      %v498 = vadd.f32 %v385, %v497
      %v499 = vpop.f32.mrb[0].mxu0
      %v500 = vpop.f32.mrb[0].mxu0
      %v501 = vadd.f32 %v388, %v500
      %v502 = vpop.f32.mrb[0].mxu0
      %503 = vmatprep.mubr.bf16.mxu0 0
      %504 = vmatmul.mubr.bf16.gmra.mrb[0].mxu0 %v313
      %v505 = vpop.f32.mrb[0].mxu0
      %v506 = vadd.f32 %v393, %v505
      %v507 = vpop.f32.mrb[0].mxu0
      %v508 = vpop.f32.mrb[0].mxu0
      %v509 = vadd.f32 %v396, %v508
      %v510 = vpop.f32.mrb[0].mxu0
      %511 = vmatprep.mubr.bf16.mxu0 0
      %512 = vmatmul.mubr.bf16.gmra.mrb[0].mxu0 %v316
      %v513 = vpop.f32.mrb[0].mxu0
      %v514 = vadd.f32 %v401, %v513
      %v515 = vpop.f32.mrb[0].mxu0
      %v516 = vpop.f32.mrb[0].mxu0
      %v517 = vadd.f32 %v404, %v516
      %v518 = vpop.f32.mrb[0].mxu0
      %519 = vmatprep.mubr.bf16.mxu0 0
      %520 = vmatmul.mubr.bf16.gmra.mrb[0].mxu0 %v319
      %v521 = vpop.f32.mrb[0].mxu0
      %v522 = vadd.f32 %v409, %v521
      %v523 = vpop.f32.mrb[0].mxu0
      %v524 = vpop.f32.mrb[0].mxu0
      %v525 = vadd.f32 %v412, %v524
      %v526 = vpop.f32.mrb[0].mxu0
      %527 = vmatprep.mubr.bf16.mxu0 0
      %528 = vmatmul.mubr.bf16.gmra.mrb[0].mxu0 %v322
      %v529 = vpop.f32.mrb[0].mxu0
      %v530 = vadd.f32 %v417, %v529
      %v531 = vpop.f32.mrb[0].mxu0
      %v532 = vpop.f32.mrb[0].mxu0
      %v533 = vadd.f32 %v420, %v532
      %v534 = vpop.f32.mrb[0].mxu0
      %535 = vmatprep.mubr.bf16.mxu0 0
      %536 = vmatmul.mubr.bf16.gmra.mrb[0].mxu0 %v325
      %v537 = vpop.f32.mrb[0].mxu0
      %v538 = vadd.f32 %v425, %v537
      %v539 = vpop.f32.mrb[0].mxu0
      %v540 = vpop.f32.mrb[0].mxu0
      %v541 = vadd.f32 %v428, %v540
      %v542 = vpop.f32.mrb[0].mxu0
      %543 = vdwg.mxu0
      %s544 = scalar_lea.vmem %s1, 16
      %v545 = vld [vmem:[%s544] sm:$0xf]
      %v546 = vld [vmem:[%s544 + $0x4] sm:$0x3]
      %v549 = vunpack.c.l.b16 %v253
      %v550 = vunpack.c.l.b16 %v254
      %v551 = vpack.c.b16 %v550, %v549
      %v554 = vunpack.c.l.b16 %v545
      %v555 = vunpack.c.l.b16 %v546
      %v556 = vpack.c.b16 %v555, %v554
      %v558 = vsel %vm305, %v551, 0
      %v561 = vsel %vm330, %v556, 0
      %563 = vmatprep.subr.bf16.mxu0 0
      %564 = vmatpush1.bf16.msra.mxu0 %v561
      %565 = vmatprep.subr.bf16.mxu0 0
      %566 = vmatpush1.bf16.msra.mxu0 0
      %567 = vmatprep.subr.bf16.mxu0 0
      %568 = vmatpush1.bf16.msra.mxu0 0
      %569 = vmatprep.subr.bf16.mxu0 0
      %570 = vmatpush1.bf16.msra.mxu0 0
      %571 = vmatprep.subr.bf16.mxu0 0
      %572 = vmatpush1.bf16.msra.mxu0 0
      %573 = vmatprep.subr.bf16.mxu0 0
      %574 = vmatpush1.bf16.msra.mxu0 0
      %575 = vmatprep.subr.bf16.mxu0 0
      %576 = vmatpush1.bf16.msra.mxu0 0
      %577 = vmatprep.subr.bf16.mxu0 0
      %578 = vmatpush1.bf16.msra.mxu0 0
      %579 = vmatprep.subr.bf16.mxu0 0
      %580 = vmatpush1.bf16.msra.mxu0 0
      %581 = vmatprep.subr.bf16.mxu0 0
      %582 = vmatpush1.bf16.msra.mxu0 0
      %583 = vmatprep.subr.bf16.mxu0 0
      %584 = vmatpush1.bf16.msra.mxu0 0
      %585 = vmatprep.subr.bf16.mxu0 0
      %586 = vmatpush1.bf16.msra.mxu0 0
      %587 = vmatprep.subr.bf16.mxu0 0
      %588 = vmatpush1.bf16.msra.mxu0 0
      %589 = vmatprep.subr.bf16.mxu0 0
      %590 = vmatpush1.bf16.msra.mxu0 0
      %591 = vmatprep.subr.bf16.mxu0 0
      %592 = vmatpush1.bf16.msra.mxu0 0
      %593 = vmatprep.subr.bf16.mxu0 0
      %594 = vmatpush1.bf16.msra.mxu0 0
      %595 = vmatprep.mubr.bf16.mxu0 0
      %596 = vmatmul.mubr.bf16.gmra.mrb[0].mxu0 %v310
      %v597 = vpop.f32.mrb[0].mxu0
      %v598 = vadd.f32 0.0, %v597
      %v599 = vpop.f32.mrb[0].mxu0
      %v600 = vpop.f32.mrb[0].mxu0
      %v601 = vadd.f32 0.0, %v600
      %v602 = vpop.f32.mrb[0].mxu0
      %603 = vmatprep.mubr.bf16.mxu0 0
      %604 = vmatmul.mubr.bf16.gmra.mrb[0].mxu0 %v313
      %v605 = vpop.f32.mrb[0].mxu0
      %v606 = vadd.f32 0.0, %v605
      %v607 = vpop.f32.mrb[0].mxu0
      %v608 = vpop.f32.mrb[0].mxu0
      %v609 = vadd.f32 0.0, %v608
      %v610 = vpop.f32.mrb[0].mxu0
      %611 = vmatprep.mubr.bf16.mxu0 0
      %612 = vmatmul.mubr.bf16.gmra.mrb[0].mxu0 %v316
      %v613 = vpop.f32.mrb[0].mxu0
      %v614 = vadd.f32 0.0, %v613
      %v615 = vpop.f32.mrb[0].mxu0
      %v616 = vpop.f32.mrb[0].mxu0
      %v617 = vadd.f32 0.0, %v616
      %v618 = vpop.f32.mrb[0].mxu0
      %619 = vmatprep.mubr.bf16.mxu0 0
      %620 = vmatmul.mubr.bf16.gmra.mrb[0].mxu0 %v319
      %v621 = vpop.f32.mrb[0].mxu0
      %v622 = vadd.f32 0.0, %v621
      %v623 = vpop.f32.mrb[0].mxu0
      %v624 = vpop.f32.mrb[0].mxu0
      %v625 = vadd.f32 0.0, %v624
      %v626 = vpop.f32.mrb[0].mxu0
      %627 = vmatprep.mubr.bf16.mxu0 0
      %628 = vmatmul.mubr.bf16.gmra.mrb[0].mxu0 %v322
      %v629 = vpop.f32.mrb[0].mxu0
      %v630 = vadd.f32 0.0, %v629
      %v631 = vpop.f32.mrb[0].mxu0
      %v632 = vpop.f32.mrb[0].mxu0
      %v633 = vadd.f32 0.0, %v632
      %v634 = vpop.f32.mrb[0].mxu0
      %635 = vmatprep.mubr.bf16.mxu0 0
      %636 = vmatmul.mubr.bf16.gmra.mrb[0].mxu0 %v325
      %v637 = vpop.f32.mrb[0].mxu0
      %v638 = vadd.f32 0.0, %v637
      %v639 = vpop.f32.mrb[0].mxu0
      %v640 = vpop.f32.mrb[0].mxu0
      %v641 = vadd.f32 0.0, %v640
      %v642 = vpop.f32.mrb[0].mxu0
      %643 = vmatprep.mubr.bf16.mxu0 0
      %644 = vmatmul.mubr.bf16.gmra.mrb[0].mxu0 %v328
      %v645 = vpop.f32.mrb[0].mxu0
      %v646 = vadd.f32 0.0, %v645
      %v647 = vpop.f32.mrb[0].mxu0
      %v648 = vpop.f32.mrb[0].mxu0
      %v649 = vadd.f32 0.0, %v648
      %v650 = vpop.f32.mrb[0].mxu0
      %651 = vmatprep.mubr.bf16.mxu0 0
      %652 = vmatmul.mubr.bf16.gmra.mrb[0].mxu0 %v558
      %v653 = vpop.f32.mrb[0].mxu0
      %v654 = vadd.f32 0.0, %v653
      %v655 = vpop.f32.mrb[0].mxu0
      %v656 = vpop.f32.mrb[0].mxu0
      %v657 = vadd.f32 0.0, %v656
      %v658 = vpop.f32.mrb[0].mxu0
      %659 = vdwg.mxu0
      %v660 = vadd.f32 %v482, %v598
      %v661 = vadd.f32 %v485, %v601
      %v662 = vadd.f32 %v490, %v606
      %v663 = vadd.f32 %v493, %v609
      %v664 = vadd.f32 %v498, %v614
      %v665 = vadd.f32 %v501, %v617
      %v666 = vadd.f32 %v506, %v622
      %v667 = vadd.f32 %v509, %v625
      %v668 = vadd.f32 %v514, %v630
      %v669 = vadd.f32 %v517, %v633
      %v670 = vadd.f32 %v522, %v638
      %v671 = vadd.f32 %v525, %v641
      %v672 = vadd.f32 %v530, %v646
      %v673 = vadd.f32 %v533, %v649
      %v674 = vadd.f32 %v538, %v654
      %v675 = vadd.f32 %v541, %v657
      %v676 = vld [vmem:[%s2] sm:$0x1]
      %v678 = vlaneseq
      %v679 = vshrl.u32 %v678, 7
      %v680 = vsub.s32 0, %v679
      %v681 = vrot.slane %v676, %v680
      %v683 = vadd.f32 %v660, %v681
      %v684 = vadd.f32 %v661, %v681
      %v685 = vadd.f32 %v662, %v681
      %v686 = vadd.f32 %v663, %v681
      %v687 = vadd.f32 %v664, %v681
      %v688 = vadd.f32 %v665, %v681
      %v689 = vadd.f32 %v666, %v681
      %v690 = vadd.f32 %v667, %v681
      %v691 = vadd.f32 %v668, %v681
      %v692 = vadd.f32 %v669, %v681
      %v693 = vadd.f32 %v670, %v681
      %v694 = vadd.f32 %v671, %v681
      %v695 = vadd.f32 %v672, %v681
      %v696 = vadd.f32 %v673, %v681
      %v697 = vadd.f32 %v674, %v681
      %v698 = vadd.f32 %v675, %v681
      %v699 = vld [vmem:[%s3] sm:$0x1]
      %vm700 = vcmp.ge.f32.partialorder %v683, 0.0
      %vm701 = vcmp.ge.f32.partialorder %v684, 0.0
      %vm702 = vcmp.ge.f32.partialorder %v685, 0.0
      %vm703 = vcmp.ge.f32.partialorder %v686, 0.0
      %vm704 = vcmp.ge.f32.partialorder %v687, 0.0
      %vm705 = vcmp.ge.f32.partialorder %v688, 0.0
      %vm706 = vcmp.ge.f32.partialorder %v689, 0.0
      %vm707 = vcmp.ge.f32.partialorder %v690, 0.0
      %vm708 = vcmp.ge.f32.partialorder %v691, 0.0
      %vm709 = vcmp.ge.f32.partialorder %v692, 0.0
      %vm710 = vcmp.ge.f32.partialorder %v693, 0.0
      %vm711 = vcmp.ge.f32.partialorder %v694, 0.0
      %vm712 = vcmp.ge.f32.partialorder %v695, 0.0
      %vm713 = vcmp.ge.f32.partialorder %v696, 0.0
      %vm714 = vcmp.ge.f32.partialorder %v697, 0.0
      %vm715 = vcmp.ge.f32.partialorder %v698, 0.0
      %v717 = vlaneseq
      %v718 = vshrl.u32 %v717, 7
      %v719 = vsub.s32 0, %v718
      %v720 = vrot.slane %v699, %v719
      %v722 = vmul.f32 %v683, %v720
      %v723 = vmul.f32 %v684, %v720
      %v724 = vmul.f32 %v685, %v720
      %v725 = vmul.f32 %v686, %v720
      %v726 = vmul.f32 %v687, %v720
      %v727 = vmul.f32 %v688, %v720
      %v728 = vmul.f32 %v689, %v720
      %v729 = vmul.f32 %v690, %v720
      %v730 = vmul.f32 %v691, %v720
      %v731 = vmul.f32 %v692, %v720
      %v732 = vmul.f32 %v693, %v720
      %v733 = vmul.f32 %v694, %v720
      %v734 = vmul.f32 %v695, %v720
      %v735 = vmul.f32 %v696, %v720
      %v736 = vmul.f32 %v697, %v720
      %v737 = vmul.f32 %v698, %v720
      %v738 = vsel %vm700, %v683, %v722
      %v739 = vsel %vm701, %v684, %v723
      %v740 = vsel %vm702, %v685, %v724
      %v741 = vsel %vm703, %v686, %v725
      %v742 = vsel %vm704, %v687, %v726
      %v743 = vsel %vm705, %v688, %v727
      %v744 = vsel %vm706, %v689, %v728
      %v745 = vsel %vm707, %v690, %v729
      %v746 = vsel %vm708, %v691, %v730
      %v747 = vsel %vm709, %v692, %v731
      %v748 = vsel %vm710, %v693, %v732
      %v749 = vsel %vm711, %v694, %v733
      %v750 = vsel %vm712, %v695, %v734
      %v751 = vsel %vm713, %v696, %v735
      %v752 = vsel %vm714, %v697, %v736
      %v753 = vsel %vm715, %v698, %v737
      %754 = vst [vmem:[%s233] sm:$0xff] %v738
      %755 = vst [vmem:[%s233 + $0x8] sm:$0xff] %v739
      %756 = vst [vmem:[%s233 + $0x10] sm:$0xff] %v740
      %757 = vst [vmem:[%s233 + $0x18] sm:$0xff] %v741
      %758 = vst [vmem:[%s233 + $0x20] sm:$0xff] %v742
      %759 = vst [vmem:[%s233 + $0x28] sm:$0xff] %v743
      %760 = vst [vmem:[%s233 + $0x30] sm:$0xff] %v744
      %761 = vst [vmem:[%s233 + $0x38] sm:$0xff] %v745
      %762 = vst [vmem:[%s233 + $0x40] sm:$0xff] %v746
      %763 = vst [vmem:[%s233 + $0x48] sm:$0xff] %v747
      %764 = vst [vmem:[%s233 + $0x50] sm:$0xff] %v748
      %765 = vst [vmem:[%s233 + $0x58] sm:$0xff] %v749
      %766 = vst [vmem:[%s233 + $0x60] sm:$0xff] %v750
      %767 = vst [vmem:[%s233 + $0x68] sm:$0xff] %v751
      %768 = vst [vmem:[%s233 + $0x70] sm:$0xff] %v752
      %769 = vst [vmem:[%s233 + $0x78] sm:$0xff] %v753
      %p770 = scmp.lt.s32.totalorder %s19, 1
      %s771 = scalar_select %p770, %s19, 1
      %p772 = scmp.lt.s32.totalorder %s20, 1
      %s773 = scalar_select %p772, %s20, 1
      %s774 = smul.addr %s773, 16
      %s775 = smul.addr %s771, 32
      %s776 = sadd.s32 %s774, %s775
      %s777 = smul.addr %s776, 8
      %s778 = scalar_lea.vmem %s4, %s777
      // Predicated region
      $region37: #{upsample_block_pallas.1} parent=35 // pred_check
        %p779 = pneg %p138
      $region38: #{upsample_block_pallas.1} parent=35 // pred_check_branch
        %781 = sbr.rel (%p779) target = $region40
      $region39: #{upsample_block_pallas.1} parent=35 // pred_region
        _
      $region40: #{upsample_block_pallas.1} parent=35 // pred_fallthru
        _
    $region36: #{upsample_block_pallas.1} parent=5 // pred_fallthru
      _
    %p782 = scmp.le.s32.totalorder 2, %s10
    // Predicated region
    $region41: #{upsample_block_pallas.1} parent=5 // pred_check
      %p783 = pneg %p782
    $region42: #{upsample_block_pallas.1} parent=5 // pred_check_branch
      %785 = sbr.rel (%p783) target = $region44
    $region43: #{upsample_block_pallas.1} parent=5 // pred_region
      %s786 = ssub.s32 %s10, 2
      // Predicated region
      $region45: #{upsample_block_pallas.1} parent=43 // pred_check
        %p787 = pneg %p144
      $region46: #{upsample_block_pallas.1} parent=43 // pred_check_branch
        %789 = sbr.rel (%p787) target = $region48
      $region47: #{upsample_block_pallas.1} parent=43 // pred_region
        %p790 = scmp.lt.s32.totalorder %s21, 1
        %s791 = scalar_select %p790, %s21, 1
        %p792 = scmp.lt.s32.totalorder %s22, 1
        %s793 = scalar_select %p792, %s22, 1
        %s794 = smul.addr %s793, 16
        %s795 = smul.addr %s791, 32
        %s796 = sadd.s32 %s794, %s795
        %s797 = smul.addr %s796, 8
        %s798 = scalar_lea.vmem %s4, %s797
      $region48: #{upsample_block_pallas.1} parent=43 // pred_fallthru
        _
    $region44: #{upsample_block_pallas.1} parent=5 // pred_fallthru
      _
  $region6: #{upsample_block_pallas.1} parent=0 // loop_footer
    %s14 = sadd.s32 1, %s10
  $region7: #{upsample_block_pallas.1} parent=0 // loop_footer_branch
    %9 = sbr.rel target = $region3
  $region8: #{upsample_block_pallas.1} parent=0 // loop_exit
    _

</llo_original>
